<compile_context>
chip_gen: v7x
topology: tpu7x:2x2x1
jax: 0.10.0
libtpu: 0.0.40
codegen_flags: <defaults>
</compile_context>

<pallas_src>
import jax
import jax.numpy as jnp
from jax.experimental import pallas as pl
from jax.experimental.pallas import tpu as pltpu


def _round_up(x, m):
    return ((x + m - 1) // m) * m


# ---------------------------- Pallas kernel ----------------------------------
def _patch_embed_kernel(x_ref, w_ref, b_ref, o_ref):
    """One row-tile of the im2col GEMM: bf16 [tm, K] @ bf16 [K, E] + bias (f32)."""
    o_ref[...] = (
        jnp.dot(x_ref[...], w_ref[...], preferred_element_type=jnp.float32)
        + b_ref[...]
    )


# ------------------------------ wrappers --------------------------------------
def prepare_proj_params(weight, bias):
    """One-time parameter prep (do outside the hot path).

    weight: [E, C, P, P] (PyTorch Conv2d layout) -> [K, E] bf16, K = C*P*P
    bias:   [E]                                  -> [1, E] f32
    """
    e = weight.shape[0]
    k = weight.shape[1] * weight.shape[2] * weight.shape[3]
    w_flat = jnp.transpose(weight.reshape(e, k)).astype(jnp.bfloat16)   # [K, E]
    b2d = bias.reshape(1, e).astype(jnp.float32)
    return w_flat, b2d


def patch_embed(x, w_flat, b2d, patch_size, *, tm_max=1024,
                vmem_limit_bytes=48 * 1024 * 1024):
    """PatchEmbedding forward.

    x:      [B, C, H, W]  f32 (H, W multiples of patch_size)
    w_flat: [K, E] bf16   (from prepare_proj_params)
    b2d:    [1, E] f32
    returns [B, (H/P)*(W/P), E] f32  == proj(x).flatten(2).transpose(1, 2)
    """
    b, c, h, w = x.shape
    p = patch_size
    assert h % p == 0 and w % p == 0
    hp, wp = h // p, w // p
    l = hp * wp
    k = c * p * p
    e = w_flat.shape[1]
    m = b * l
    assert w_flat.shape[0] == k

    # im2col: patch (i, j) of batch b -> row b*L + i*Wp + j, features (c, kh, kw)
    # to match the flattened Conv2d weight.  Transpose + bf16 cast fuse into one
    # XLA pass over x (no extra f32 copy, no separate pad pass).
    xp = x.reshape(b, c, hp, p, wp, p)
    xp = jnp.transpose(xp, (0, 2, 4, 1, 3, 5)).reshape(m, k).astype(jnp.bfloat16)

    # Row tile: big (mem-bound; small tiles make per-step overhead dominate),
    # multiple of 8 (sublane), <= m so only the *last* grid step is ragged.
    if m < 8:                       # degenerate tiny-problem fallback
        xp = jnp.pad(xp, ((0, 8 - m), (0, 0)))
        m_rows = 8
    else:
        m_rows = m
    tm = min(tm_max, (m_rows // 8) * 8)

    # Shrink tm if the double-buffered working set would not fit the VMEM budget
    # (relevant for ViT-scale K/E, and for v7x/v5e's smaller scoped VMEM).
    def _tile_bytes(t):
        return 2 * t * k * 2 + 2 * t * e * 4 + k * e * 2 + e * 4
    while tm > 256 and _tile_bytes(tm) > vmem_limit_bytes - (8 << 20):
        tm = max(256, (tm // 16) * 8)

    grid = (pl.cdiv(m_rows, tm),)

    out = pl.pallas_call(
        _patch_embed_kernel,
        out_shape=jax.ShapeDtypeStruct((m_rows, e), jnp.float32),
        grid=grid,
        in_specs=[
            pl.BlockSpec((tm, k), lambda i: (i, 0)),   # streamed patch rows
            pl.BlockSpec((k, e), lambda i: (0, 0)),    # resident weight
            pl.BlockSpec((1, e), lambda i: (0, 0)),    # resident bias
        ],
        out_specs=pl.BlockSpec((tm, e), lambda i: (i, 0)),
        compiler_params=pltpu.CompilerParams(
            dimension_semantics=("parallel",),
            vmem_limit_bytes=vmem_limit_bytes),
    )(xp, w_flat, b2d)

    if m_rows != m:
        out = out[:m]
    return out.reshape(b, l, e)


def patch_embedding_forward(x, weight, bias, patch_size, **kwargs):
    """Convenience wrapper taking raw PyTorch-layout Conv2d params."""
    w_flat, b2d = prepare_proj_params(weight, bias)
    return patch_embed(x, w_flat, b2d, patch_size, **kwargs)


# --------------------------------- demo ---------------------------------------
if __name__ == "__main__":
    key = jax.random.PRNGKey(0)
    kx, kw_, kb = jax.random.split(key, 3)

    # Module defaults: in_channels=3, embed_dim=96, patch_size=4; small spatial.
    B, C, H, W = 2, 3, 16, 16
    E, P = 96, 4

    x = jax.random.normal(kx, (B, C, H, W), jnp.float32)
    weight = 0.1 * jax.random.normal(kw_, (E, C, P, P), jnp.float32)
    bias = 0.1 * jax.random.normal(kb, (E,), jnp.float32)

    out = patch_embedding_forward(x, weight, bias, P)
    out = jax.block_until_ready(out)
    assert out.shape == (B, (H // P) * (W // P), E)

    # Reference: the actual strided conv, then flatten(2).transpose(1, 2).
    ref = jax.lax.conv_general_dilated(
        x, weight, window_strides=(P, P), padding="VALID",
        dimension_numbers=("NCHW", "OIHW", "NCHW"),
        precision=jax.lax.Precision.HIGHEST)
    ref = jnp.transpose(ref.reshape(B, E, -1), (0, 2, 1)) + bias.reshape(1, 1, E)

    # bf16 inputs on the MXU (f32 accumulation): ~1e-2 relative vs the f32
    # HIGHEST-precision conv reference.
    err = float(jnp.max(jnp.abs(out - ref)))
    scale = float(jnp.max(jnp.abs(ref)))
    assert err <= 3e-2 * max(scale, 1.0), f"mismatch vs conv: {err} (scale {scale})"

    print("KERNEL_OK")
</pallas_src>

<mosaic_0001>
module attributes {stable_mosaic.version = 11 : i64} {
  func.func @_patch_embed_kernel(%arg0: i32, %arg1: memref<32x48xbf16, #tpu.memory_space<vmem>>, %arg2: memref<48x96xbf16, #tpu.memory_space<vmem>>, %arg3: memref<1x96xf32, #tpu.memory_space<vmem>>, %arg4: memref<32x96xf32, #tpu.memory_space<vmem>>) attributes {dimension_semantics = [#tpu.dimension_semantics<parallel>], iteration_bounds = array<i64: 1>, scalar_prefetch = 0 : i64, scratch_operands = 0 : i64, tpu.core_type = #tpu.core_type<tc>, window_params = [{transform_indices = @transform_0, window_bounds = array<i64: 32, 48>}, {pipeline_mode = #tpu.pipeline_mode<synchronous>, transform_indices = @transform_1, window_bounds = array<i64: 48, 96>}, {pipeline_mode = #tpu.pipeline_mode<synchronous>, transform_indices = @transform_2, window_bounds = array<i64: 1, 96>}, {transform_indices = @transform_3, window_bounds = array<i64: 32, 96>}]} {
    %c0 = arith.constant 0 : index
    %c0_0 = arith.constant 0 : index
    %0 = vector.load %arg1[%c0, %c0_0] : memref<32x48xbf16, #tpu.memory_space<vmem>>, vector<32x48xbf16>
    %c0_1 = arith.constant 0 : index
    %c0_2 = arith.constant 0 : index
    %1 = vector.load %arg2[%c0_1, %c0_2] : memref<48x96xbf16, #tpu.memory_space<vmem>>, vector<48x96xbf16>
    %cst = arith.constant dense<0.000000e+00> : vector<32x96xf32>
    %2 = tpu.matmul %0, %1, %cst {dimension_numbers = #tpu.dot_dimension_numbers<[1], [0], [0], [1], [0, 0, 1, 1], [], []>} : vector<32x48xbf16>, vector<48x96xbf16>, vector<32x96xf32> -> vector<32x96xf32>
    %c0_3 = arith.constant 0 : index
    %c0_4 = arith.constant 0 : index
    %3 = vector.load %arg3[%c0_3, %c0_4] : memref<1x96xf32, #tpu.memory_space<vmem>>, vector<1x96xf32>
    %4 = vector.broadcast %3 : vector<1x96xf32> to vector<32x96xf32>
    %5 = arith.addf %2, %4 : vector<32x96xf32>
    %c0_5 = arith.constant 0 : index
    %c0_6 = arith.constant 0 : index
    %6 = vector.load %arg4[%c0_5, %c0_6] : memref<32x96xf32, #tpu.memory_space<vmem>>, vector<32x96xf32>
    tpu.vector_store %arg4[%c0_5, %c0_6], %5 {strides = array<i32>} : memref<32x96xf32, #tpu.memory_space<vmem>>, vector<32x96xf32>,
    return
  }
  func.func @transform_0(%arg0: i32) -> (i32, i32) {
    %c0_i32 = arith.constant 0 : i32
    %c0_i32_0 = arith.constant 0 : i32
    return %arg0, %c0_i32 : i32, i32
  }
  func.func @transform_1(%arg0: i32) -> (i32, i32) {
    %c0_i32 = arith.constant 0 : i32
    %c0_i32_0 = arith.constant 0 : i32
    %c0_i32_1 = arith.constant 0 : i32
    return %c0_i32, %c0_i32_0 : i32, i32
  }
  func.func @transform_2(%arg0: i32) -> (i32, i32) {
    %c0_i32 = arith.constant 0 : i32
    %c0_i32_0 = arith.constant 0 : i32
    %c0_i32_1 = arith.constant 0 : i32
    return %c0_i32, %c0_i32_0 : i32, i32
  }
  func.func @transform_3(%arg0: i32) -> (i32, i32) {
    %c0_i32 = arith.constant 0 : i32
    %c0_i32_0 = arith.constant 0 : i32
    return %arg0, %c0_i32 : i32, i32
  }
}

</mosaic_0001>

<llo_original>
// kernel: tpu_custom_call.1
$region0: #{tpu_custom_call.1}
  #allocation0 [shape = 'u32[]', space=smem, size = 0x4, offset = 0x4, fixed_abs, tag = 'smem constant byte address 0x4 - core index']
  #allocation1 [shape = 'u32[144,128]{1,0:T(1,128)}', space=vmem, size = 0x12000, scoped, tag = 'internal scratch']
  %s0 = inlined_call_operand.hbm [shape: bf16[32,48], index: 0, kind: input, shape index: {}]
  %s1 = inlined_call_operand.hbm [shape: bf16[48,96], index: 1, kind: input, shape index: {}]
  %s2 = inlined_call_operand.vmem [shape: f32[1,96], index: 2, kind: input, shape index: {}]
  %s3 = inlined_call_operand.hbm [shape: f32[32,96], index: 3, kind: output, shape index: {}]
  %s4 = sld [smem:[#allocation0]]
  $region30: #{tpu_custom_call.1} parent=0
    _
  %s6 = ssub.s32 1, %s4
  %s7 = scalar_select 0, %s6, %s4
  $region1: #{tpu_custom_call.1} parent=0
    #allocation2 [shape = 'u8[8192]{0}', space=vmem, size = 0x2000, scoped, tag = 'input window, operand 0, single buffered']
    #allocation3 [shape = 's32[1]{0}', space=sflag, size = 0x4, scoped, tag = 'scoped memory for tpu_custom_call.1']
    #allocation4 [shape = 's32[1]{0}', space=sflag, size = 0x4, scoped, tag = 'scoped memory for tpu_custom_call.1']
    #allocation5 [shape = 'u8[12288]{0}', space=vmem, size = 0x3000, scoped, tag = 'input window, operand 1, single buffered']
    #allocation6 [shape = 's32[1]{0}', space=sflag, size = 0x4, scoped, tag = 'scoped memory for tpu_custom_call.1']
    #allocation7 [shape = 'u8[16384]{0}', space=vmem, size = 0x4000, scoped, tag = 'output window, operand 0, single buffered']
    %8 = vsyncpa [#allocation3], 0
    %9 = vsyncpa [#allocation6], 0
    %10 = vsyncpa [#allocation4], 0
    // Predicated region
    $region2: #{tpu_custom_call.1} parent=1 // pred_check
      _
    $region3: #{tpu_custom_call.1} parent=1 // pred_check_branch
      %12 = sbr.rel (0) target = $region5
    $region4: #{tpu_custom_call.1} parent=1 // pred_region
      %s14 = ssub.s32 256, 256
      %15 = vsyncadd [#allocation3], %s14
      %s16 = sshll.u32 [#allocation2], 4
      %s17 = int_to_ptr.vmem [resolvable:$true] %s16
      %22 = dma.hbm_to_vmem [thread:$0]  %s0, 256, %s17, [#allocation3], 64, 64, 4
    $region5: #{tpu_custom_call.1} parent=1 // pred_fallthru
      _
    // Predicated region
    $region6: #{tpu_custom_call.1} parent=1 // pred_check
      _
    $region7: #{tpu_custom_call.1} parent=1 // pred_check_branch
      %24 = sbr.rel (0) target = $region9
    $region8: #{tpu_custom_call.1} parent=1 // pred_region
      %s26 = ssub.s32 384, 384
      %27 = vsyncadd [#allocation6], %s26
      %s28 = sshll.u32 [#allocation5], 4
      %s29 = int_to_ptr.vmem [resolvable:$true] %s28
      %34 = dma.hbm_to_vmem [thread:$0]  %s1, 384, %s29, [#allocation6], 64, 64, 4
    $region9: #{tpu_custom_call.1} parent=1 // pred_fallthru
      _
    // Predicated region
    $region10: #{tpu_custom_call.1} parent=1 // pred_check
      _
    $region11: #{tpu_custom_call.1} parent=1 // pred_check_branch
      %36 = sbr.rel (0) target = $region13
    $region12: #{tpu_custom_call.1} parent=1 // pred_region
      _
    $region13: #{tpu_custom_call.1} parent=1 // pred_fallthru
      _
    // Predicated region
    $region14: #{tpu_custom_call.1} parent=1 // pred_check
      _
    $region15: #{tpu_custom_call.1} parent=1 // pred_check_branch
      %38 = sbr.rel (0) target = $region17
    $region16: #{tpu_custom_call.1} parent=1 // pred_region
      %39 = dma.done [#allocation3], 256
    $region17: #{tpu_custom_call.1} parent=1 // pred_fallthru
      _
    // Predicated region
    $region18: #{tpu_custom_call.1} parent=1 // pred_check
      _
    $region19: #{tpu_custom_call.1} parent=1 // pred_check_branch
      %41 = sbr.rel (0) target = $region21
    $region20: #{tpu_custom_call.1} parent=1 // pred_region
      %42 = dma.done [#allocation6], 384
    $region21: #{tpu_custom_call.1} parent=1 // pred_fallthru
      _
    %v44 = vld [vmem:[#allocation2] sm:$0xf]
    %v45 = vld [vmem:[#allocation2 + $0x4] sm:$0xf]
    %v46 = vld [vmem:[#allocation2 + $0x8] sm:$0xf]
    %v47 = vld [vmem:[#allocation2 + $0xc] sm:$0xf]
    %v48 = vld [vmem:[#allocation5] sm:$0xf]
    %v49 = vld [vmem:[#allocation5 + $0x4] sm:$0xf]
    %v50 = vld [vmem:[#allocation5 + $0x8] sm:$0xf]
    %v51 = vld [vmem:[#allocation5 + $0xc] sm:$0xf]
    %v52 = vld [vmem:[#allocation5 + $0x10] sm:$0xf]
    %v53 = vld [vmem:[#allocation5 + $0x14] sm:$0xf]
    %v54 = vld [vmem:[%s2] sm:$0x1]
    %v56 = vlaneseq
    %v57 = vshrl.u32 %v56, 7
    %v58 = vsub.s32 0, %v57
    %v59 = vrot.slane %v54, %v58
    %v65 = vunpack.c.l.b16 %v44
    %v66 = vunpack.c.l.b16 %v45
    %v67 = vunpack.c.l.b16 %v46
    %v68 = vunpack.c.l.b16 %v47
    %v69 = vpack.c.b16 %v66, %v65
    %v70 = vpack.c.b16 %v68, %v67
    %v77 = vunpack.c.l.b16 %v48
    %v78 = vunpack.c.l.b16 %v49
    %v79 = vunpack.c.l.b16 %v50
    %v80 = vunpack.c.l.b16 %v51
    %v81 = vunpack.c.l.b16 %v52
    %v82 = vunpack.c.l.b16 %v53
    %v83 = vpack.c.b16 %v78, %v77
    %v84 = vpack.c.b16 %v80, %v79
    %v85 = vpack.c.b16 %v82, %v81
    %vm89 = vcmask 392192
    %v91 = vsel %vm89, %v69, 0
    %v94 = vsel %vm89, %v70, 0
    %96 = vmatprep.subr.bf16.mxu0 0
    %97 = vmatpush1.bf16.msra.mxu0 %v83
    %98 = vmatprep.subr.bf16.mxu0 0
    %99 = vmatpush1.bf16.msra.mxu0 %v84
    %100 = vmatprep.subr.bf16.mxu0 0
    %101 = vmatpush1.bf16.msra.mxu0 %v85
    %102 = vmatprep.subr.bf16.mxu0 0
    %103 = vmatpush1.bf16.msra.mxu0 0
    %104 = vmatprep.subr.bf16.mxu0 0
    %105 = vmatpush1.bf16.msra.mxu0 0
    %106 = vmatprep.subr.bf16.mxu0 0
    %107 = vmatpush1.bf16.msra.mxu0 0
    %108 = vmatprep.subr.bf16.mxu0 0
    %109 = vmatpush1.bf16.msra.mxu0 0
    %110 = vmatprep.subr.bf16.mxu0 0
    %111 = vmatpush1.bf16.msra.mxu0 0
    %112 = vmatprep.subr.bf16.mxu0 0
    %113 = vmatpush1.bf16.msra.mxu0 0
    %114 = vmatprep.subr.bf16.mxu0 0
    %115 = vmatpush1.bf16.msra.mxu0 0
    %116 = vmatprep.subr.bf16.mxu0 0
    %117 = vmatpush1.bf16.msra.mxu0 0
    %118 = vmatprep.subr.bf16.mxu0 0
    %119 = vmatpush1.bf16.msra.mxu0 0
    %120 = vmatprep.subr.bf16.mxu0 0
    %121 = vmatpush1.bf16.msra.mxu0 0
    %122 = vmatprep.subr.bf16.mxu0 0
    %123 = vmatpush1.bf16.msra.mxu0 0
    %124 = vmatprep.subr.bf16.mxu0 0
    %125 = vmatpush1.bf16.msra.mxu0 0
    %126 = vmatprep.subr.bf16.mxu0 0
    %127 = vmatpush1.bf16.msra.mxu0 0
    %128 = vmatprep.mubr.bf16.mxu0 0
    %129 = vmatmul.mubr.bf16.gmra.mrb[0].mxu0 %v91
    %v130 = vpop.f32.mrb[0].mxu0
    %v131 = vadd.f32 %v59, %v130
    %v132 = vpop.f32.mrb[0].mxu0
    %v133 = vpop.f32.mrb[0].mxu0
    %v134 = vadd.f32 %v59, %v133
    %v135 = vpop.f32.mrb[0].mxu0
    %136 = vmatprep.mubr.bf16.mxu0 0
    %137 = vmatmul.mubr.bf16.gmra.mrb[0].mxu0 %v94
    %v138 = vpop.f32.mrb[0].mxu0
    %v139 = vadd.f32 %v59, %v138
    %v140 = vpop.f32.mrb[0].mxu0
    %v141 = vpop.f32.mrb[0].mxu0
    %v142 = vadd.f32 %v59, %v141
    %v143 = vpop.f32.mrb[0].mxu0
    %144 = vdwg.mxu0
    %vm145 = vcmask 785408
    %146 = vst.msk [vmem:[#allocation7] sm:$0xff] %vm145, %v131
    %147 = vst.msk [vmem:[#allocation7 + $0x8] sm:$0xff] %vm145, %v134
    %148 = vst.msk [vmem:[#allocation7 + $0x10] sm:$0xff] %vm145, %v139
    %149 = vst.msk [vmem:[#allocation7 + $0x18] sm:$0xff] %vm145, %v142
    // Predicated region
    $region22: #{tpu_custom_call.1} parent=1 // pred_check
      _
    $region23: #{tpu_custom_call.1} parent=1 // pred_check_branch
      %151 = sbr.rel (0) target = $region25
    $region24: #{tpu_custom_call.1} parent=1 // pred_region
      %s153 = ssub.s32 512, 512
      %154 = vsyncadd [#allocation4], %s153
      %s155 = sshll.u32 [#allocation7], 4
      %s156 = int_to_ptr.vmem [resolvable:$true] %s155
      %161 = dma.vmem_to_hbm [thread:$0]  %s156, 512, %s3, [#allocation4], 128, 128, 8
    $region25: #{tpu_custom_call.1} parent=1 // pred_fallthru
      _
    // Predicated region
    $region26: #{tpu_custom_call.1} parent=1 // pred_check
      _
    $region27: #{tpu_custom_call.1} parent=1 // pred_check_branch
      %163 = sbr.rel (0) target = $region29
    $region28: #{tpu_custom_call.1} parent=1 // pred_region
      %164 = dma.done [#allocation4], 512
    $region29: #{tpu_custom_call.1} parent=1 // pred_fallthru
      _
    %165 = vsyncpa [#allocation3], 1
    %166 = vsyncpa [#allocation6], 1
    %167 = vsyncpa [#allocation4], 1

</llo_original>
